<compile_context>
chip_gen: v5e
topology: v5e:2x2
jax: 0.10.0
libtpu: 0.0.40
codegen_flags: <defaults>
</compile_context>

<pallas_src>
import jax
import jax.numpy as jnp
from jax.experimental import pallas as pl
from jax.experimental.pallas import tpu as pltpu

_LANE = 128
_SIXTH = 1.0 / 6.0


def _hs_kernel(x_ref, o_ref):
    x = x_ref[...]
    clip = jnp.clip(x + 3.0, 0.0, 6.0) * _SIXTH   # multiply, not divide
    o_ref[...] = x * clip


def _round_up(n: int, m: int) -> int:
    return ((n + m - 1) // m) * m


def _vmem_budget():
    """Generation-aware (target_block_bytes, vmem_limit_bytes | None)."""
    try:
        vmem_cap = int(pltpu.get_tpu_info().vmem_capacity_bytes)
    except Exception:
        # Unknown chip / query unavailable: conservative block, default limit.
        return 2 * 1024 * 1024, None
    if vmem_cap <= 64 * 1024 * 1024:
        # v7x-class: 64 MiB VMEM, ~3.2 TB/s HBM -> larger blocks so the fixed
        # per-grid-step overhead is <~10% of the per-block stream time.
        target = 5 * 1024 * 1024
    else:
        # v5e / v6e class: 128 MiB VMEM, 0.8-1.4 TB/s HBM; ~4 MiB is past the
        # roofline knee. (v5e scoped-VMEM *default* is only 16 MiB, so we set
        # vmem_limit_bytes explicitly below.)
        target = 4 * 1024 * 1024
    # in + out, double-buffered = 4x block bytes, plus headroom for scratch.
    limit = min(4 * target + 8 * 1024 * 1024, vmem_cap // 2)
    return target, limit


def _hs_2d(x2d: jax.Array) -> jax.Array:
    """Run the HS kernel on a [rows, cols] slab (cols is the lane dim)."""
    rows, cols = x2d.shape
    itemsize = jnp.dtype(x2d.dtype).itemsize
    # Sublane packing multiple: f32 -> 8, bf16/f16 -> 16, int8/fp8 -> 32.
    sub_mult = max(8, 32 // max(itemsize, 1))

    target_block_bytes, vmem_limit = _vmem_budget()

    # VMEM row footprint includes lane padding to a multiple of 128.
    row_bytes = _round_up(cols, _LANE) * itemsize
    tile_r = max(sub_mult,
                 ((target_block_bytes // row_bytes) // sub_mult) * sub_mult)
    tile_r = min(tile_r, _round_up(rows, sub_mult))

    grid = (pl.cdiv(rows, tile_r),)

    cost = pl.CostEstimate(
        flops=5 * rows * cols,
        transcendentals=0,
        bytes_accessed=2 * rows * cols * itemsize,
    )

    return pl.pallas_call(
        _hs_kernel,
        out_shape=jax.ShapeDtypeStruct(x2d.shape, x2d.dtype),
        grid_spec=pltpu.PrefetchScalarGridSpec(
            num_scalar_prefetch=0,
            grid=grid,
            in_specs=[pl.BlockSpec((tile_r, cols), lambda i: (i, 0))],
            out_specs=pl.BlockSpec((tile_r, cols), lambda i: (i, 0)),
        ),
        compiler_params=pltpu.CompilerParams(
            dimension_semantics=("parallel",),
            vmem_limit_bytes=vmem_limit,
        ),
        cost_estimate=cost,
    )(x2d)


def _hard_swish_impl(x: jax.Array) -> jax.Array:
    """Applies HS (hard-swish) elementwise. Accepts any shape (e.g. NCHW)."""
    orig_shape = x.shape
    total = x.size
    if total == 0:
        return x

    if total % _LANE == 0:
        # Lane-dense fast path (common NCHW case): reshape is free for a
        # contiguous array, every store is an unmasked full-lane vst.
        out = _hs_2d(x.reshape(total // _LANE, _LANE))
        return out.reshape(orig_shape)

    # Ragged case: keep the original trailing dim as the lane dim so Pallas
    # masks the partial lanes itself -- single kernel call, no pad / slice /
    # concatenate, hence no extra full-array HBM traffic.
    if x.ndim >= 2 and total >= 1024:
        cols = orig_shape[-1]
        itemsize = jnp.dtype(x.dtype).itemsize
        # Guard: even one 32-sublane block of (padded) rows must fit in VMEM.
        if _round_up(cols, _LANE) * itemsize * 32 <= 8 * 1024 * 1024:
            out = _hs_2d(x.reshape(-1, cols))
            return out.reshape(orig_shape)

    # Tiny or awkward shapes: plain XLA elementwise is already optimal.
    return x * (jnp.clip(x + 3.0, 0.0, 6.0) * _SIXTH)


hard_swish = jax.jit(_hard_swish_impl)


def hard_swish_ref(x: jax.Array) -> jax.Array:
    """Pure-JAX reference matching the PyTorch HS module."""
    return x * (jnp.clip(x + 3.0, 0.0, 6.0) / 6.0)


if __name__ == "__main__":
    key = jax.random.PRNGKey(0)
    # NCHW input, small shape consistent with a conv-backbone activation.
    x = jax.random.normal(key, (2, 4, 16, 16), dtype=jnp.float32) * 4.0

    y = jax.block_until_ready(hard_swish(x))
    y_ref = hard_swish_ref(x)

    assert y.shape == x.shape and y.dtype == x.dtype
    assert jnp.allclose(y, y_ref, atol=1e-6, rtol=1e-5), "mismatch vs reference"

    print("KERNEL_OK")
</pallas_src>

<mosaic_0001>
module attributes {stable_mosaic.version = 11 : i64} {
  func.func @_hs_kernel(%arg0: i32, %arg1: memref<16x128xf32, #tpu.memory_space<vmem>>, %arg2: memref<16x128xf32, #tpu.memory_space<vmem>>) attributes {dimension_semantics = [#tpu.dimension_semantics<parallel>], iteration_bounds = array<i64: 1>, scalar_prefetch = 0 : i64, scratch_operands = 0 : i64, tpu.core_type = #tpu.core_type<tc>, window_params = [{transform_indices = @transform_0, window_bounds = array<i64: 16, 128>}, {transform_indices = @transform_1, window_bounds = array<i64: 16, 128>}]} {
    %c0 = arith.constant 0 : index
    %c0_0 = arith.constant 0 : index
    %0 = vector.load %arg1[%c0, %c0_0] : memref<16x128xf32, #tpu.memory_space<vmem>>, vector<16x128xf32>
    %cst = arith.constant 3.000000e+00 : f32
    %1 = vector.broadcast %cst : f32 to vector<16x128xf32>
    %2 = arith.addf %0, %1 : vector<16x128xf32>
    %cst_1 = arith.constant 0.000000e+00 : f32
    %cst_2 = arith.constant 6.000000e+00 : f32
    %3 = vector.broadcast %cst_1 : f32 to vector<16x128xf32>
    %4 = arith.maximumf %3, %2 : vector<16x128xf32>
    %5 = vector.broadcast %cst_2 : f32 to vector<16x128xf32>
    %6 = arith.minimumf %5, %4 : vector<16x128xf32>
    %cst_3 = arith.constant 0.166666672 : f32
    %7 = vector.broadcast %cst_3 : f32 to vector<16x128xf32>
    %8 = arith.mulf %6, %7 : vector<16x128xf32>
    %9 = arith.mulf %0, %8 : vector<16x128xf32>
    %c0_4 = arith.constant 0 : index
    %c0_5 = arith.constant 0 : index
    %10 = vector.load %arg2[%c0_4, %c0_5] : memref<16x128xf32, #tpu.memory_space<vmem>>, vector<16x128xf32>
    tpu.vector_store %arg2[%c0_4, %c0_5], %9 {strides = array<i32>} : memref<16x128xf32, #tpu.memory_space<vmem>>, vector<16x128xf32>,
    return
  }
  func.func @transform_0(%arg0: i32) -> (i32, i32) {
    %c0_i32 = arith.constant 0 : i32
    %c0_i32_0 = arith.constant 0 : i32
    return %arg0, %c0_i32 : i32, i32
  }
  func.func @transform_1(%arg0: i32) -> (i32, i32) {
    %c0_i32 = arith.constant 0 : i32
    %c0_i32_0 = arith.constant 0 : i32
    return %arg0, %c0_i32 : i32, i32
  }
}

</mosaic_0001>

<llo_original>
// kernel: _hard_swish_impl.1
$region0: #{_hard_swish_impl.1}
  #allocation0 [shape = 'u32[]', space=smem, size = 0x4, offset = 0x4, fixed_abs, tag = 'smem constant byte address 0x4 - core index']
  #allocation1 [shape = 'u32[72,128]{1,0:T(1,128)}', space=vmem, size = 0x9000, scoped, tag = 'internal scratch']
  %s0 = inlined_call_operand.vmem [shape: f32[16,128], index: 0, kind: input, shape index: {}]
  %s1 = inlined_call_operand.vmem [shape: f32[16,128], index: 1, kind: output, shape index: {}]
  %s2 = sld [smem:[#allocation0]]
  $region14: #{_hard_swish_impl.1} parent=0
    _
  %s4 = ssub.s32 1, %s2
  %s5 = scalar_select 0, %s4, %s2
  // Predicated region
  $region2: #{_hard_swish_impl.1} parent=0 // pred_check
    _
  $region3: #{_hard_swish_impl.1} parent=0 // pred_check_branch
    %7 = sbr.rel (0) target = $region5
  $region4: #{_hard_swish_impl.1} parent=0 // pred_region
    _
  $region5: #{_hard_swish_impl.1} parent=0 // pred_fallthru
    _
  %v8 = vld [vmem:[%s0] sm:$0xff]
  %v9 = vld [vmem:[%s0 + $0x8] sm:$0xff]
  %v10 = vadd.f32 %v8, 3.0
  %v11 = vadd.f32 %v9, 3.0
  %v12 = vmax.f32 %v10, 0.0
  %v13 = vmax.f32 %v11, 0.0
  %v14 = vmin.f32 %v12, 6.0
  %v15 = vmin.f32 %v13, 6.0
  %v16 = vmul.f32 %v14, 0.16666667
  %v17 = vmul.f32 %v15, 0.16666667
  %v18 = vmul.f32 %v8, %v16
  %v19 = vmul.f32 %v9, %v17
  %20 = vst [vmem:[%s1] sm:$0xff] %v18
  %21 = vst [vmem:[%s1 + $0x8] sm:$0xff] %v19
  // Predicated region
  $region6: #{_hard_swish_impl.1} parent=0 // pred_check
    _
  $region7: #{_hard_swish_impl.1} parent=0 // pred_check_branch
    %23 = sbr.rel (0) target = $region9
  $region8: #{_hard_swish_impl.1} parent=0 // pred_region
    _
  $region9: #{_hard_swish_impl.1} parent=0 // pred_fallthru
    _
  // Predicated region
  $region10: #{_hard_swish_impl.1} parent=0 // pred_check
    _
  $region11: #{_hard_swish_impl.1} parent=0 // pred_check_branch
    %25 = sbr.rel (0) target = $region13
  $region12: #{_hard_swish_impl.1} parent=0 // pred_region
    _
  $region13: #{_hard_swish_impl.1} parent=0 // pred_fallthru
    _

</llo_original>
